<compile_context>
chip_gen: v6e
topology: v6e:2x2x1
jax: 0.10.0
libtpu: 0.0.40
codegen_flags: <defaults>
</compile_context>

<pallas_src>
import jax
import jax.numpy as jnp
from jax.experimental import pallas as pl
from jax.experimental.pallas import tpu as pltpu

_VPAD = 128  # lane-aligned width the value head is padded to inside the kernel


def _heads_kernel(x_ref, w_ref, b_ref, policy_ref, value_ref):
    """Fused value-head + policy-head kernel (single lane-dense MXU pass).

    x_ref:      (B, D)        bf16 flattened board features
    w_ref:      (D, P+128)    bf16 combined weight = [policy | value(zero-padded)]
    b_ref:      (1, P+128)    f32 combined bias    = [policy | value(zero-padded)]
    policy_ref: (B, P)        f32 raw move logits
    value_ref:  (B, 128)      f32 tanh(value) in lane 0, zeros elsewhere
    """
    x = x_ref[...]

    # One MXU matmul for both heads, f32 accumulate, single f32 bias add.
    acc = jnp.dot(x, w_ref[...], preferred_element_type=jnp.float32)
    acc = acc + b_ref[...]

    p_width = policy_ref.shape[-1]          # static, 128-lane aligned
    policy_ref[...] = acc[:, :p_width]      # unmasked lane-dense store
    value_ref[...] = jnp.tanh(acc[:, p_width:])  # tanh on EUP; padded lanes -> tanh(0)=0


def base_model_forward(x_nchw, wv, bv, wp, bp):
    """Concrete BaseModel.forward: board state -> (value, policy)."""
    B = x_nchw.shape[0]
    D = x_nchw.shape[1] * x_nchw.shape[2] * x_nchw.shape[3]
    P = wp.shape[1]  # assumed 128-lane aligned (it is, at P=128)

    # Glue: flatten NCHW board planes to (B, D) bf16 feature rows.
    x_flat = x_nchw.reshape(B, D).astype(jnp.bfloat16)

    # Combined lane-dense weight/bias: [policy (P) | value padded to 128 lanes].
    # (Under jit this folds into constant/param preprocessing, not per-step work.)
    wv_pad = jnp.zeros((D, _VPAD), jnp.bfloat16).at[:, :1].set(wv.astype(jnp.bfloat16))
    w_comb = jnp.concatenate([wp.astype(jnp.bfloat16), wv_pad], axis=1)      # (D, P+128)
    bv_pad = jnp.zeros((1, _VPAD), jnp.float32).at[:, :1].set(bv.astype(jnp.float32))
    b_comb = jnp.concatenate([bp.astype(jnp.float32), bv_pad], axis=1)       # (1, P+128)

    policy, value_padded = pl.pallas_call(
        _heads_kernel,
        out_shape=(
            jax.ShapeDtypeStruct((B, P), jnp.float32),      # policy logits
            jax.ShapeDtypeStruct((B, _VPAD), jnp.float32),  # lane-dense value slab
        ),
        # Tiny model: everything fits VMEM as single full-array blocks.
        in_specs=[
            pl.BlockSpec(memory_space=pltpu.VMEM),  # x_flat  (B, D)       bf16
            pl.BlockSpec(memory_space=pltpu.VMEM),  # w_comb  (D, P+128)   bf16
            pl.BlockSpec(memory_space=pltpu.VMEM),  # b_comb  (1, P+128)   f32
        ],
        out_specs=(
            pl.BlockSpec(memory_space=pltpu.VMEM),  # policy (B, P)
            pl.BlockSpec(memory_space=pltpu.VMEM),  # value  (B, 128)
        ),
    )(x_flat, w_comb, b_comb)

    value = value_padded[:, :1]  # lane-dense in-kernel, sliced to (B, 1) here
    return value, policy


if __name__ == "__main__":
    # Small, chess-flavored shapes: batch=2, 4 piece planes, 8x8 board,
    # policy over 128 candidate moves (lane-aligned).
    B, C, H, W = 2, 4, 8, 8
    D = C * H * W      # 256
    P = 128            # policy logits

    key = jax.random.PRNGKey(0)
    kx, kwv, kbv, kwp, kbp = jax.random.split(key, 5)

    x = jax.random.normal(kx, (B, C, H, W), dtype=jnp.float32)

    # Deterministic synthetic parameters (this is an abstract base class;
    # no checkpoint exists to load).
    wv = jax.random.normal(kwv, (D, 1), dtype=jnp.float32) * 0.05
    bv = jax.random.normal(kbv, (1, 1), dtype=jnp.float32) * 0.05
    wp = jax.random.normal(kwp, (D, P), dtype=jnp.float32) * 0.05
    bp = jax.random.normal(kbp, (1, P), dtype=jnp.float32) * 0.05

    value, policy = jax.jit(base_model_forward)(x, wv, bv, wp, bp)
    jax.block_until_ready((value, policy))

    # Sanity check against the plain-JAX f32 reference of the same
    # concretization (kernel runs the matmul in bf16 -> looser tolerance).
    x_flat = x.reshape(B, D)
    ref_value = jnp.tanh(x_flat @ wv + bv)
    ref_policy = x_flat @ wp + bp
    assert value.shape == (B, 1) and policy.shape == (B, P)
    assert jnp.allclose(value, ref_value, atol=2e-2, rtol=2e-2)
    assert jnp.allclose(policy, ref_policy, atol=2e-2, rtol=2e-2)

    print("KERNEL_OK")
</pallas_src>

<mosaic_0001>
module attributes {stable_mosaic.version = 11 : i64} {
  func.func @_heads_kernel(%arg0: memref<2x256xbf16, #tpu.memory_space<vmem>>, %arg1: memref<256x256xbf16, #tpu.memory_space<vmem>>, %arg2: memref<1x256xf32, #tpu.memory_space<vmem>>, %arg3: memref<2x128xf32, #tpu.memory_space<vmem>>, %arg4: memref<2x128xf32, #tpu.memory_space<vmem>>) attributes {dimension_semantics = [], scalar_prefetch = 0 : i64, scratch_operands = 0 : i64, tpu.core_type = #tpu.core_type<tc>} {
    %c0 = arith.constant 0 : index
    %c0_0 = arith.constant 0 : index
    %0 = vector.load %arg0[%c0, %c0_0] : memref<2x256xbf16, #tpu.memory_space<vmem>>, vector<2x256xbf16>
    %c0_1 = arith.constant 0 : index
    %c0_2 = arith.constant 0 : index
    %1 = vector.load %arg1[%c0_1, %c0_2] : memref<256x256xbf16, #tpu.memory_space<vmem>>, vector<256x256xbf16>
    %cst = arith.constant dense<0.000000e+00> : vector<2x256xf32>
    %2 = tpu.matmul %0, %1, %cst {dimension_numbers = #tpu.dot_dimension_numbers<[1], [0], [0], [1], [0, 0, 1, 1], [], []>} : vector<2x256xbf16>, vector<256x256xbf16>, vector<2x256xf32> -> vector<2x256xf32>
    %c0_3 = arith.constant 0 : index
    %c0_4 = arith.constant 0 : index
    %3 = vector.load %arg2[%c0_3, %c0_4] : memref<1x256xf32, #tpu.memory_space<vmem>>, vector<1x256xf32>
    %4 = vector.broadcast %3 : vector<1x256xf32> to vector<2x256xf32>
    %5 = arith.addf %2, %4 : vector<2x256xf32>
    %6 = vector.extract_strided_slice %5 {offsets = [0, 0], sizes = [2, 128], strides = [1, 1]} : vector<2x256xf32> to vector<2x128xf32>
    %c0_5 = arith.constant 0 : index
    %c0_6 = arith.constant 0 : index
    %7 = vector.load %arg3[%c0_5, %c0_6] : memref<2x128xf32, #tpu.memory_space<vmem>>, vector<2x128xf32>
    tpu.vector_store %arg3[%c0_5, %c0_6], %6 {strides = array<i32>} : memref<2x128xf32, #tpu.memory_space<vmem>>, vector<2x128xf32>,
    %8 = vector.extract_strided_slice %5 {offsets = [0, 128], sizes = [2, 128], strides = [1, 1]} : vector<2x256xf32> to vector<2x128xf32>
    %9 = math.tanh %8 : vector<2x128xf32>
    %c0_7 = arith.constant 0 : index
    %c0_8 = arith.constant 0 : index
    %10 = vector.load %arg4[%c0_7, %c0_8] : memref<2x128xf32, #tpu.memory_space<vmem>>, vector<2x128xf32>
    tpu.vector_store %arg4[%c0_7, %c0_8], %9 {strides = array<i32>} : memref<2x128xf32, #tpu.memory_space<vmem>>, vector<2x128xf32>,
    return
  }
}

</mosaic_0001>

<llo_original>
// kernel: base_model_forward.1
$region0: #{base_model_forward.1}
  #allocation0 [shape = 'u32[]', space=smem, size = 0x4, offset = 0x4, fixed_abs, tag = 'smem constant byte address 0x4 - core index']
  #allocation1 [shape = 'u32[144,128]{1,0:T(1,128)}', space=vmem, size = 0x12000, scoped, tag = 'internal scratch']
  %s0 = inlined_call_operand.vmem [shape: bf16[2,256], index: 0, kind: input, shape index: {}]
  %s1 = inlined_call_operand.vmem [shape: bf16[256,256], index: 1, kind: input, shape index: {}]
  %s2 = inlined_call_operand.vmem [shape: f32[1,256], index: 2, kind: input, shape index: {}]
  %s3 = inlined_call_operand.hbm [shape: f32[2,128], index: 3, kind: output, shape index: {0}]
  %s4 = inlined_call_operand.vmem [shape: f32[2,128], index: 4, kind: output, shape index: {1}]
  %5 = xla_tuple %s3, %s4
  %s6 = sld [smem:[#allocation0]]
  $region30: #{base_model_forward.1} parent=0
    _
  %s8 = ssub.s32 1, %s6
  %s9 = scalar_select 0, %s8, %s6
  $region1: #{base_model_forward.1} parent=0
    #allocation2 [shape = 'u8[1024]{0}', space=vmem, size = 0x400, scoped, tag = 'output window, operand 0, single buffered']
    #allocation3 [shape = 's32[1]{0}', space=sflag, size = 0x4, scoped, tag = 'scoped memory for base_model_forward.1']
    %10 = vsyncpa [#allocation3], 0
    // Predicated region
    $region2: #{base_model_forward.1} parent=1 // pred_check
      _
    $region3: #{base_model_forward.1} parent=1 // pred_check_branch
      %12 = sbr.rel (0) target = $region5
    $region4: #{base_model_forward.1} parent=1 // pred_region
      _
    $region5: #{base_model_forward.1} parent=1 // pred_fallthru
      _
    // Predicated region
    $region6: #{base_model_forward.1} parent=1 // pred_check
      _
    $region7: #{base_model_forward.1} parent=1 // pred_check_branch
      %14 = sbr.rel (0) target = $region9
    $region8: #{base_model_forward.1} parent=1 // pred_region
      _
    $region9: #{base_model_forward.1} parent=1 // pred_fallthru
      _
    // Predicated region
    $region10: #{base_model_forward.1} parent=1 // pred_check
      _
    $region11: #{base_model_forward.1} parent=1 // pred_check_branch
      %16 = sbr.rel (0) target = $region13
    $region12: #{base_model_forward.1} parent=1 // pred_region
      _
    $region13: #{base_model_forward.1} parent=1 // pred_fallthru
      _
    %v17 = vld [vmem:[%s0] sm:$0x3]
    %v18 = vld [vmem:[%s1] sm:$0xff]
    %v19 = vld [vmem:[%s1 + $0x8] sm:$0xff]
    %v20 = vld [vmem:[%s1 + $0x10] sm:$0xff]
    %v21 = vld [vmem:[%s1 + $0x18] sm:$0xff]
    %v22 = vld [vmem:[%s1 + $0x20] sm:$0xff]
    %v23 = vld [vmem:[%s1 + $0x28] sm:$0xff]
    %v24 = vld [vmem:[%s1 + $0x30] sm:$0xff]
    %v25 = vld [vmem:[%s1 + $0x38] sm:$0xff]
    %v26 = vld [vmem:[%s1 + $0x40] sm:$0xff]
    %v27 = vld [vmem:[%s1 + $0x48] sm:$0xff]
    %v28 = vld [vmem:[%s1 + $0x50] sm:$0xff]
    %v29 = vld [vmem:[%s1 + $0x58] sm:$0xff]
    %v30 = vld [vmem:[%s1 + $0x60] sm:$0xff]
    %v31 = vld [vmem:[%s1 + $0x68] sm:$0xff]
    %v32 = vld [vmem:[%s1 + $0x70] sm:$0xff]
    %v33 = vld [vmem:[%s1 + $0x78] sm:$0xff]
    %v34 = vld [vmem:[%s1 + $0x80] sm:$0xff]
    %v35 = vld [vmem:[%s1 + $0x88] sm:$0xff]
    %v36 = vld [vmem:[%s1 + $0x90] sm:$0xff]
    %v37 = vld [vmem:[%s1 + $0x98] sm:$0xff]
    %v38 = vld [vmem:[%s1 + $0xa0] sm:$0xff]
    %v39 = vld [vmem:[%s1 + $0xa8] sm:$0xff]
    %v40 = vld [vmem:[%s1 + $0xb0] sm:$0xff]
    %v41 = vld [vmem:[%s1 + $0xb8] sm:$0xff]
    %v42 = vld [vmem:[%s1 + $0xc0] sm:$0xff]
    %v43 = vld [vmem:[%s1 + $0xc8] sm:$0xff]
    %v44 = vld [vmem:[%s1 + $0xd0] sm:$0xff]
    %v45 = vld [vmem:[%s1 + $0xd8] sm:$0xff]
    %v46 = vld [vmem:[%s1 + $0xe0] sm:$0xff]
    %v47 = vld [vmem:[%s1 + $0xe8] sm:$0xff]
    %v48 = vld [vmem:[%s1 + $0xf0] sm:$0xff]
    %v49 = vld [vmem:[%s1 + $0xf8] sm:$0xff]
    %v50 = vld [vmem:[%s2] sm:$0x3]
    %v52 = vlaneseq
    %v53 = vshrl.u32 %v52, 7
    %v54 = vsub.s32 0, %v53
    %v55 = vrot.slane %v50, %v54
    %v56 = vlaneseq
    %v57 = vshrl.u32 %v56, 7
    %v58 = vsub.s32 1, %v57
    %v59 = vrot.slane %v50, %v58
    %v64 = vunpack.c.l.s4 1966171168
    %v65 = vunpack.c.0.s8 %v64
    %v66 = vlaneseq
    %v67 = vshrl.u32 %v66, 7
    %v68 = vsub.s32 %v65, %v67
    %v69 = vrot.slane %v17, %v68
    %v70 = vcombine.high %v69, %v69
    %v72 = vunpack.c.l.s4 1966171168
    %v73 = vunpack.c.0.s8 %v72
    %v74 = vlaneseq
    %v75 = vshrl.u32 %v74, 7
    %v76 = vsub.s32 %v73, %v75
    %v77 = vrot.slane %v69, %v76
    %v79 = vunpack.c.l.s4 1966171168
    %v80 = vunpack.c.0.s8 %v79
    %v81 = vlaneseq
    %v82 = vshrl.u32 %v81, 7
    %v83 = vsub.s32 %v80, %v82
    %v84 = vrot.slane %v70, %v83
    %v119 = vunpack.c.l.b16 %v18
    %v120 = vunpack.c.h.b16 %v18
    %v121 = vunpack.c.l.b16 %v19
    %v122 = vunpack.c.h.b16 %v19
    %v123 = vunpack.c.l.b16 %v20
    %v124 = vunpack.c.h.b16 %v20
    %v125 = vunpack.c.l.b16 %v21
    %v126 = vunpack.c.h.b16 %v21
    %v127 = vunpack.c.l.b16 %v22
    %v128 = vunpack.c.h.b16 %v22
    %v129 = vunpack.c.l.b16 %v23
    %v130 = vunpack.c.h.b16 %v23
    %v131 = vunpack.c.l.b16 %v24
    %v132 = vunpack.c.h.b16 %v24
    %v133 = vunpack.c.l.b16 %v25
    %v134 = vunpack.c.h.b16 %v25
    %v135 = vunpack.c.l.b16 %v26
    %v136 = vunpack.c.h.b16 %v26
    %v137 = vunpack.c.l.b16 %v27
    %v138 = vunpack.c.h.b16 %v27
    %v139 = vunpack.c.l.b16 %v28
    %v140 = vunpack.c.h.b16 %v28
    %v141 = vunpack.c.l.b16 %v29
    %v142 = vunpack.c.h.b16 %v29
    %v143 = vunpack.c.l.b16 %v30
    %v144 = vunpack.c.h.b16 %v30
    %v145 = vunpack.c.l.b16 %v31
    %v146 = vunpack.c.h.b16 %v31
    %v147 = vunpack.c.l.b16 %v32
    %v148 = vunpack.c.h.b16 %v32
    %v149 = vunpack.c.l.b16 %v33
    %v150 = vunpack.c.h.b16 %v33
    %v151 = vunpack.c.l.b16 %v34
    %v152 = vunpack.c.h.b16 %v34
    %v153 = vunpack.c.l.b16 %v35
    %v154 = vunpack.c.h.b16 %v35
    %v155 = vunpack.c.l.b16 %v36
    %v156 = vunpack.c.h.b16 %v36
    %v157 = vunpack.c.l.b16 %v37
    %v158 = vunpack.c.h.b16 %v37
    %v159 = vunpack.c.l.b16 %v38
    %v160 = vunpack.c.h.b16 %v38
    %v161 = vunpack.c.l.b16 %v39
    %v162 = vunpack.c.h.b16 %v39
    %v163 = vunpack.c.l.b16 %v40
    %v164 = vunpack.c.h.b16 %v40
    %v165 = vunpack.c.l.b16 %v41
    %v166 = vunpack.c.h.b16 %v41
    %v167 = vunpack.c.l.b16 %v42
    %v168 = vunpack.c.h.b16 %v42
    %v169 = vunpack.c.l.b16 %v43
    %v170 = vunpack.c.h.b16 %v43
    %v171 = vunpack.c.l.b16 %v44
    %v172 = vunpack.c.h.b16 %v44
    %v173 = vunpack.c.l.b16 %v45
    %v174 = vunpack.c.h.b16 %v45
    %v175 = vunpack.c.l.b16 %v46
    %v176 = vunpack.c.h.b16 %v46
    %v177 = vunpack.c.l.b16 %v47
    %v178 = vunpack.c.h.b16 %v47
    %v179 = vunpack.c.l.b16 %v48
    %v180 = vunpack.c.h.b16 %v48
    %v181 = vunpack.c.l.b16 %v49
    %v182 = vunpack.c.h.b16 %v49
    %v183 = vpack.c.b16 %v121, %v119
    %v184 = vpack.c.b16 %v122, %v120
    %v185 = vpack.c.b16 %v125, %v123
    %v186 = vpack.c.b16 %v126, %v124
    %v187 = vpack.c.b16 %v129, %v127
    %v188 = vpack.c.b16 %v130, %v128
    %v189 = vpack.c.b16 %v133, %v131
    %v190 = vpack.c.b16 %v134, %v132
    %v191 = vpack.c.b16 %v137, %v135
    %v192 = vpack.c.b16 %v138, %v136
    %v193 = vpack.c.b16 %v141, %v139
    %v194 = vpack.c.b16 %v142, %v140
    %v195 = vpack.c.b16 %v145, %v143
    %v196 = vpack.c.b16 %v146, %v144
    %v197 = vpack.c.b16 %v149, %v147
    %v198 = vpack.c.b16 %v150, %v148
    %v199 = vpack.c.b16 %v153, %v151
    %v200 = vpack.c.b16 %v154, %v152
    %v201 = vpack.c.b16 %v157, %v155
    %v202 = vpack.c.b16 %v158, %v156
    %v203 = vpack.c.b16 %v161, %v159
    %v204 = vpack.c.b16 %v162, %v160
    %v205 = vpack.c.b16 %v165, %v163
    %v206 = vpack.c.b16 %v166, %v164
    %v207 = vpack.c.b16 %v169, %v167
    %v208 = vpack.c.b16 %v170, %v168
    %v209 = vpack.c.b16 %v173, %v171
    %v210 = vpack.c.b16 %v174, %v172
    %v211 = vpack.c.b16 %v177, %v175
    %v212 = vpack.c.b16 %v178, %v176
    %v213 = vpack.c.b16 %v181, %v179
    %v214 = vpack.c.b16 %v182, %v180
    %247 = vmatprep.subr.bf16.mxu0 %v198
    %248 = vmatpush1.bf16.msra.mxu0 %v197
    %249 = vmatprep.subr.bf16.mxu0 %v196
    %250 = vmatpush1.bf16.msra.mxu0 %v195
    %251 = vmatprep.subr.bf16.mxu0 %v194
    %252 = vmatpush1.bf16.msra.mxu0 %v193
    %253 = vmatprep.subr.bf16.mxu0 %v192
    %254 = vmatpush1.bf16.msra.mxu0 %v191
    %255 = vmatprep.subr.bf16.mxu0 %v190
    %256 = vmatpush1.bf16.msra.mxu0 %v189
    %257 = vmatprep.subr.bf16.mxu0 %v188
    %258 = vmatpush1.bf16.msra.mxu0 %v187
    %259 = vmatprep.subr.bf16.mxu0 %v186
    %260 = vmatpush1.bf16.msra.mxu0 %v185
    %261 = vmatprep.subr.bf16.mxu0 %v184
    %262 = vmatpush1.bf16.msra.mxu0 %v183
    %263 = vmatprep.subr.bf16.mxu0 %v214
    %264 = vmatpush2.bf16.msra.mxu0 %v213
    %265 = vmatprep.subr.bf16.mxu0 %v212
    %266 = vmatpush2.bf16.msra.mxu0 %v211
    %267 = vmatprep.subr.bf16.mxu0 %v210
    %268 = vmatpush2.bf16.msra.mxu0 %v209
    %269 = vmatprep.subr.bf16.mxu0 %v208
    %270 = vmatpush2.bf16.msra.mxu0 %v207
    %271 = vmatprep.subr.bf16.mxu0 %v206
    %272 = vmatpush2.bf16.msra.mxu0 %v205
    %273 = vmatprep.subr.bf16.mxu0 %v204
    %274 = vmatpush2.bf16.msra.mxu0 %v203
    %275 = vmatprep.subr.bf16.mxu0 %v202
    %276 = vmatpush2.bf16.msra.mxu0 %v201
    %277 = vmatprep.subr.bf16.mxu0 %v200
    %278 = vmatpush2.bf16.msra.mxu0 %v199
    %279 = vmatprep.mubr.bf16.mxu0 %v84
    %280 = vmatmul.mubr.bf16.gmra.mxu0 %v77
    %v281 = vpop.f32.mrf.mxu0
    %v282 = vadd.f32 %v55, %v281
    %v283 = vpop.f32.mrf.mxu0
    %v284 = vadd.f32 %v59, %v283
    %v285 = vpop.f32.mrf.mxu0
    %v286 = vpop.f32.mrf.mxu0
    %287 = vdwg.mxu0
    %288 = vst [vmem:[#allocation2] sm:$0x3] %v282
    %v289 = vtanh.pop %v284
    %290 = vst [vmem:[%s4] sm:$0x3] %v289
    // Predicated region
    $region14: #{base_model_forward.1} parent=1 // pred_check
      _
    $region15: #{base_model_forward.1} parent=1 // pred_check_branch
      %292 = sbr.rel (0) target = $region17
    $region16: #{base_model_forward.1} parent=1 // pred_region
      %s294 = ssub.s32 32, 32
      %295 = vsyncadd [#allocation3], %s294
      %s297 = sshll.u32 [#allocation2], 4
      %s298 = int_to_ptr.vmem [resolvable:$true] %s297
      %300 = dma.vmem_to_hbm [thread:$0]  %s298, 32, %s3, [#allocation3]
    $region17: #{base_model_forward.1} parent=1 // pred_fallthru
      _
    // Predicated region
    $region18: #{base_model_forward.1} parent=1 // pred_check
      _
    $region19: #{base_model_forward.1} parent=1 // pred_check_branch
      %302 = sbr.rel (0) target = $region21
    $region20: #{base_model_forward.1} parent=1 // pred_region
      _
    $region21: #{base_model_forward.1} parent=1 // pred_fallthru
      _
    // Predicated region
    $region22: #{base_model_forward.1} parent=1 // pred_check
      _
    $region23: #{base_model_forward.1} parent=1 // pred_check_branch
      %304 = sbr.rel (0) target = $region25
    $region24: #{base_model_forward.1} parent=1 // pred_region
      %305 = dma.done [#allocation3], 32
    $region25: #{base_model_forward.1} parent=1 // pred_fallthru
      _
    // Predicated region
    $region26: #{base_model_forward.1} parent=1 // pred_check
      _
    $region27: #{base_model_forward.1} parent=1 // pred_check_branch
      %307 = sbr.rel (0) target = $region29
    $region28: #{base_model_forward.1} parent=1 // pred_region
      _
    $region29: #{base_model_forward.1} parent=1 // pred_fallthru
      _
    %308 = vsyncpa [#allocation3], 1

</llo_original>
